<compile_context>
chip_gen: v7x
topology: tpu7x:2x2x1
jax: 0.10.0
libtpu: 0.0.40
codegen_flags: <defaults>
</compile_context>

<pallas_src>
import math

import jax
import jax.numpy as jnp
from jax.experimental import pallas as pl
from jax.experimental.pallas import tpu as pltpu

_LOG_2PI = math.log(2.0 * math.pi)

_LANES = 128             # lane width of the packed (rows, 128) view
_MAX_BLOCK_ROWS = 2048   # sublane rows per grid step (y_hat block = 2 MiB f32)
_CHUNK_ROWS = 32         # rows loaded/accumulated per inner step (4 f32 vregs)
_MIN_PALLAS_ELEMS = 1 << 16   # below this the fused-XLA fast path wins


def _make_partial_kernel(rows_blk, chunk_rows, total_rows, needs_mask):
    """Builds the per-block kernel.

    Refs seen by the kernel:
      yhat_ref : (2, rows_blk, _LANES)  native dtype (ch0 = mean, ch1 = log_std)
      y_ref    : (rows_blk, _LANES)     native dtype
      out_ref  : (8, _LANES)            float32, per-block partial sum
    Per-element value accumulated: log_std + 0.5*(y-mean)^2*exp(-2*log_std);
    the 0.5*log(2*pi) constant is added once in the wrapper.
    """
    n_chunks = rows_blk // chunk_rows

    def kernel(yhat_ref, y_ref, out_ref):
        if needs_mask:
            # Rows >= total_rows in the (clipped) last row-block hold garbage.
            valid_rows = total_rows - pl.program_id(1) * rows_blk
            row_iota = jax.lax.broadcasted_iota(jnp.int32, (chunk_rows, 1), 0)

        # Chunked load-and-accumulate straight from the refs: keeps live state
        # to a handful of vregs even at rows_blk = 2048 (no spills).
        acc = jnp.zeros((chunk_rows, _LANES), jnp.float32)
        for c in range(n_chunks):                       # static, fully unrolled
            r0 = c * chunk_rows
            mean = yhat_ref[0, pl.ds(r0, chunk_rows), :].astype(jnp.float32)
            log_std = yhat_ref[1, pl.ds(r0, chunk_rows), :].astype(jnp.float32)
            target = y_ref[pl.ds(r0, chunk_rows), :].astype(jnp.float32)
            diff = target - mean
            contrib = log_std + 0.5 * (diff * diff) * jnp.exp(-2.0 * log_std)
            if needs_mask:
                contrib = jnp.where(row_iota < (valid_rows - r0), contrib, 0.0)
            acc = acc + contrib

        # Fold (chunk_rows, 128) -> (8, 128) with pure VPU adds (no XLU reduce).
        folded = acc[0:8, :]
        for r in range(1, chunk_rows // 8):
            folded = folded + acc[r * 8:(r + 1) * 8, :]
        out_ref[...] = folded

    return kernel


def gaussian_loss_pallas(y_hat, y, size_average=True):
    """Pallas path. Requires T % 128 == 0 and T >= 1024 (see gaussian_loss)."""
    B, C, T = y_hat.shape
    if C != 2:
        raise ValueError("y_hat must have 2 channels (mean, log_std)")
    if y.shape != (B, 1, T):
        raise ValueError(f"y must have shape {(B, 1, T)}, got {y.shape}")
    if T % _LANES != 0 or (T // _LANES) < 8:
        raise ValueError(
            "gaussian_loss_pallas needs T % 128 == 0 and T >= 1024; "
            "use gaussian_loss() which falls back to fused XLA otherwise.")

    N = B * T
    R = T // _LANES                                   # packed rows per batch
    rows_blk = min(_MAX_BLOCK_ROWS, ((R + 7) // 8) * 8)
    num_row_blocks = (R + rows_blk - 1) // rows_blk
    needs_mask = (R % rows_blk) != 0
    chunk_rows = math.gcd(rows_blk, _CHUNK_ROWS)

    # Free bitcast views -- no HBM copies, channels stay in place.
    yh = y_hat.reshape(B, 2, R, _LANES)
    yv = y.reshape(B, 1, R, _LANES)

    kernel = _make_partial_kernel(rows_blk, chunk_rows, R, needs_mask)

    partials = pl.pallas_call(
        kernel,
        out_shape=jax.ShapeDtypeStruct((B * num_row_blocks * 8, _LANES),
                                       jnp.float32),
        grid=(B, num_row_blocks),
        in_specs=[
            # (batch squeezed, full channel dim 2, rows_blk, 128)
            pl.BlockSpec((None, 2, rows_blk, _LANES),
                         lambda b, i: (b, 0, i, 0)),
            # (batch squeezed, channel squeezed, rows_blk, 128)
            pl.BlockSpec((None, None, rows_blk, _LANES),
                         lambda b, i: (b, 0, i, 0)),
        ],
        out_specs=pl.BlockSpec(
            (8, _LANES), lambda b, i: (b * num_row_blocks + i, 0)),
        compiler_params=pltpu.CompilerParams(
            dimension_semantics=("parallel", "parallel")),
    )(yh, yv)

    # Tiny second-level reduction + hoisted constant + scaling, in JAX.
    total = jnp.sum(partials, dtype=jnp.float32) + jnp.float32(0.5 * _LOG_2PI * N)
    if size_average:
        return total / jnp.float32(N)    # losses.mean()
    return total / jnp.float32(T)        # losses.mean(1).sum(0)


def gaussian_loss_ref(y_hat, y, size_average=True):
    """Pure-JAX reference / fallback (mirrors the PyTorch module)."""
    y_hat = y_hat.astype(jnp.float32)
    y = y.astype(jnp.float32)
    mean = y_hat[:, :1, :]
    log_std = y_hat[:, 1:, :]
    nll = -0.5 * (
        -_LOG_2PI - 2.0 * log_std - (y - mean) ** 2 * jnp.exp(-2.0 * log_std))
    losses = jnp.squeeze(nll)            # (B, T)
    if size_average:
        return losses.mean()
    return losses.mean(1).sum(0)


def gaussian_loss(y_hat, y, size_average=True):
    """Dispatcher: Pallas for large 128-aligned T, fused XLA otherwise."""
    B, _, T = y_hat.shape
    if (T % _LANES != 0) or (T // _LANES) < 8 or (B * T) < _MIN_PALLAS_ELEMS:
        return gaussian_loss_ref(y_hat, y, size_average)
    return gaussian_loss_pallas(y_hat, y, size_average)


def _make_inputs(key, B, T, dtype=jnp.float32):
    k1, k2, k3 = jax.random.split(key, 3)
    mean = jax.random.normal(k1, (B, 1, T), dtype=jnp.float32)
    log_std = 0.5 * jax.random.normal(k2, (B, 1, T), dtype=jnp.float32)
    y_hat = jnp.concatenate([mean, log_std], axis=1).astype(dtype)   # (B, 2, T)
    y = jax.random.normal(k3, (B, 1, T), dtype=jnp.float32).astype(dtype)
    return y_hat, y


if __name__ == "__main__":
    key = jax.random.PRNGKey(0)
    k1, k2, k3 = jax.random.split(key, 3)

    loss_avg = jax.jit(lambda a, b: gaussian_loss_pallas(a, b, size_average=True))
    loss_sum = jax.jit(lambda a, b: gaussian_loss_pallas(a, b, size_average=False))

    # 1) Small aligned case: single row-block per batch element, no masking.
    y_hat, y = _make_inputs(k1, B=2, T=2048)
    out_a = jax.block_until_ready(loss_avg(y_hat, y))
    out_s = jax.block_until_ready(loss_sum(y_hat, y))
    assert jnp.allclose(out_a, gaussian_loss_ref(y_hat, y, True), rtol=1e-4, atol=1e-4)
    assert jnp.allclose(out_s, gaussian_loss_ref(y_hat, y, False), rtol=1e-4, atol=1e-4)

    # 2) Larger case: multiple row blocks + partial (masked) last block.
    #    T = 300032 -> R = 2344 rows -> blocks of 2048 + 296 valid rows.
    y_hat2, y2 = _make_inputs(k2, B=2, T=300032)
    out_a2 = jax.block_until_ready(loss_avg(y_hat2, y2))
    out_s2 = jax.block_until_ready(loss_sum(y_hat2, y2))
    assert jnp.allclose(out_a2, gaussian_loss_ref(y_hat2, y2, True), rtol=1e-4, atol=1e-4)
    assert jnp.allclose(out_s2, gaussian_loss_ref(y_hat2, y2, False), rtol=1e-4, atol=1e-4)

    # 3) bf16 inputs (halves HBM bytes; kernel upcasts per chunk).
    y_hat3, y3 = _make_inputs(k3, B=2, T=2048, dtype=jnp.bfloat16)
    out_a3 = jax.block_until_ready(loss_avg(y_hat3, y3))
    assert jnp.allclose(out_a3, gaussian_loss_ref(y_hat3, y3, True), rtol=1e-3, atol=1e-3)

    # 4) Dispatcher fast path: tiny / non-128-aligned T -> fused XLA.
    y_hat4, y4 = _make_inputs(k1, B=2, T=250)
    out_a4 = jax.block_until_ready(gaussian_loss(y_hat4, y4, size_average=True))
    assert jnp.allclose(out_a4, gaussian_loss_ref(y_hat4, y4, True), rtol=1e-5, atol=1e-5)

    print("KERNEL_OK")
</pallas_src>

<mosaic_0001>
module attributes {stable_mosaic.version = 11 : i64} {
  func.func @kernel(%arg0: i32, %arg1: i32, %arg2: memref<1x2x16x128xf32, #tpu.memory_space<vmem>>, %arg3: memref<1x1x16x128xf32, #tpu.memory_space<vmem>>, %arg4: memref<8x128xf32, #tpu.memory_space<vmem>>) attributes {dimension_semantics = [#tpu.dimension_semantics<parallel>, #tpu.dimension_semantics<parallel>], iteration_bounds = array<i64: 2, 1>, scalar_prefetch = 0 : i64, scratch_operands = 0 : i64, tpu.core_type = #tpu.core_type<tc>, window_params = [{transform_indices = @transform_0, window_bounds = array<i64: 1, 2, 16, 128>}, {transform_indices = @transform_1, window_bounds = array<i64: 1, 1, 16, 128>}, {transform_indices = @transform_2, window_bounds = array<i64: 8, 128>}]} {
    %cst = arith.constant 0.000000e+00 : f32
    %0 = vector.broadcast %cst : f32 to vector<16x128xf32>
    %c0 = arith.constant 0 : index
    %c0_0 = arith.constant 0 : index
    %c0_1 = arith.constant 0 : index
    %c0_2 = arith.constant 0 : index
    %1 = vector.load %arg2[%c0, %c0_0, %c0_1, %c0_2] : memref<1x2x16x128xf32, #tpu.memory_space<vmem>>, vector<1x1x16x128xf32>
    %2 = vector.shape_cast %1 : vector<1x1x16x128xf32> to vector<16x128xf32>
    %c0_3 = arith.constant 0 : index
    %c1 = arith.constant 1 : index
    %c0_4 = arith.constant 0 : index
    %c0_5 = arith.constant 0 : index
    %3 = vector.load %arg2[%c0_3, %c1, %c0_4, %c0_5] : memref<1x2x16x128xf32, #tpu.memory_space<vmem>>, vector<1x1x16x128xf32>
    %4 = vector.shape_cast %3 : vector<1x1x16x128xf32> to vector<16x128xf32>
    %c0_6 = arith.constant 0 : index
    %c0_7 = arith.constant 0 : index
    %c0_8 = arith.constant 0 : index
    %c0_9 = arith.constant 0 : index
    %5 = vector.load %arg3[%c0_6, %c0_7, %c0_8, %c0_9] : memref<1x1x16x128xf32, #tpu.memory_space<vmem>>, vector<1x1x16x128xf32>
    %6 = vector.shape_cast %5 : vector<1x1x16x128xf32> to vector<16x128xf32>
    %7 = arith.subf %6, %2 : vector<16x128xf32>
    %8 = arith.mulf %7, %7 : vector<16x128xf32>
    %cst_10 = arith.constant 5.000000e-01 : f32
    %9 = vector.broadcast %cst_10 : f32 to vector<16x128xf32>
    %10 = arith.mulf %9, %8 : vector<16x128xf32>
    %cst_11 = arith.constant -2.000000e+00 : f32
    %11 = vector.broadcast %cst_11 : f32 to vector<16x128xf32>
    %12 = arith.mulf %11, %4 : vector<16x128xf32>
    %13 = math.exp %12 : vector<16x128xf32>
    %14 = arith.mulf %10, %13 : vector<16x128xf32>
    %15 = arith.addf %4, %14 : vector<16x128xf32>
    %16 = arith.addf %0, %15 : vector<16x128xf32>
    %17 = vector.extract_strided_slice %16 {offsets = [0, 0], sizes = [8, 128], strides = [1, 1]} : vector<16x128xf32> to vector<8x128xf32>
    %18 = vector.extract_strided_slice %16 {offsets = [8, 0], sizes = [8, 128], strides = [1, 1]} : vector<16x128xf32> to vector<8x128xf32>
    %19 = arith.addf %17, %18 : vector<8x128xf32>
    %c0_12 = arith.constant 0 : index
    %c0_13 = arith.constant 0 : index
    %20 = vector.load %arg4[%c0_12, %c0_13] : memref<8x128xf32, #tpu.memory_space<vmem>>, vector<8x128xf32>
    tpu.vector_store %arg4[%c0_12, %c0_13], %19 {strides = array<i32>} : memref<8x128xf32, #tpu.memory_space<vmem>>, vector<8x128xf32>,
    return
  }
  func.func @transform_0(%arg0: i32, %arg1: i32) -> (i32, i32, i32, i32) {
    %c0_i32 = arith.constant 0 : i32
    %c0_i32_0 = arith.constant 0 : i32
    %c0_i32_1 = arith.constant 0 : i32
    return %arg0, %c0_i32, %arg1, %c0_i32_0 : i32, i32, i32, i32
  }
  func.func @transform_1(%arg0: i32, %arg1: i32) -> (i32, i32, i32, i32) {
    %c0_i32 = arith.constant 0 : i32
    %c0_i32_0 = arith.constant 0 : i32
    %c0_i32_1 = arith.constant 0 : i32
    return %arg0, %c0_i32, %arg1, %c0_i32_0 : i32, i32, i32, i32
  }
  func.func @transform_2(%arg0: i32, %arg1: i32) -> (i32, i32) {
    %c1_i32 = arith.constant 1 : i32
    %0 = arith.muli %arg0, %c1_i32 : i32
    %1 = arith.addi %0, %arg1 : i32
    %c0_i32 = arith.constant 0 : i32
    %c0_i32_0 = arith.constant 0 : i32
    return %1, %c0_i32 : i32, i32
  }
}

</mosaic_0001>

<llo_original>
// kernel: _lambda_.1
$region0: #{_lambda_.1}
  #allocation0 [shape = 'u32[]', space=smem, size = 0x4, offset = 0x4, fixed_abs, tag = 'smem constant byte address 0x4 - core index']
  #allocation1 [shape = 'u32[144,128]{1,0:T(1,128)}', space=vmem, size = 0x12000, scoped, tag = 'internal scratch']
  %s0 = inlined_call_operand.vmem [shape: f32[2,2,16,128], index: 0, kind: input, shape index: {}]
  %s1 = inlined_call_operand.vmem [shape: f32[2,1,16,128], index: 1, kind: input, shape index: {}]
  %s2 = inlined_call_operand.vmem [shape: f32[16,128], index: 2, kind: output, shape index: {}]
  %s3 = sld [smem:[#allocation0]]
  $region41: #{_lambda_.1} parent=0
    _
  %s5 = ssub.s32 1, %s3
  %s6 = scalar_select 0, %s5, %s3
  loop: start=0, step=1, limit=4
  $region2: #{_lambda_.1} parent=0 // loop_pre_header
    _
  $region3: #{_lambda_.1} parent=0 // loop_header
    %s8 = sphi 0, %s12
    %p9 = scmp.ge.s32.totalorder %s8, 4
    %s15 = sphi 0, %s27
    %s16 = sphi 0, %s23
    %s17 = sphi 0, %s15
    %s18 = sphi 0, %s16
    %s19 = sphi 0, %s17
    %s20 = sphi 0, %s18
    %s32 = sphi 0, %s34
    %s35 = sphi 0, %s32
    %s36 = sphi 0, %s35
    %s52 = sphi 0, %s36
    %s60 = sphi 0, %s62
    %s63 = sphi 0, %s60
    %s64 = sphi 0, %s63
    %s80 = sphi 0, %s64
    %s88 = sphi 0, %s90
    %s91 = sphi 0, %s88
    %s92 = sphi 0, %s91
    %s108 = sphi 0, %s92
  $region4: #{_lambda_.1} parent=0 // loop_header_branch
    %11 = sbr.rel (%p9) target = $region8
  $region5: #{_lambda_.1} parent=0 // loop_body
    %s13 = ssub.s32 %s8, 1
    %s14 = ssub.s32 %s8, 2
    %s21 = sadd.s32 1, %s16
    %p22 = scmp.ge.s32.totalorder %s21, 1
    %s23 = scalar_select %p22, 0, %s21
    %s24 = sadd.s32 1, %s15
    %s25 = scalar_select %p22, %s24, %s15
    %p26 = scmp.ge.s32.totalorder %s25, 2
    %s27 = scalar_select %p26, 0, %s25
    %s28 = ssub.s32 %s15, %s27
    %s29 = ssub.s32 %s16, %s23
    %s30 = sor.u32 %s28, %s29
    %p31 = scmp.eq.s32.totalorder %s30, 0
    %s33 = sadd.s32 %s32, 1
    %s34 = scalar_select %p31, %s32, %s33
    %p37 = pneg %p31
    %p38 = scmp.eq.s32.totalorder %s8, 1
    %p39 = por %p37, %p38
    %p40 = scmp.ne.s32.totalorder %s32, %s35
    %p41 = scmp.eq.s32.totalorder %s8, 0
    %p42 = por %p40, %p41
    %p43 = scmp.ne.s32.totalorder %s32, %s35
    %p44 = scmp.eq.s32.totalorder %s13, 1
    %p45 = por %p43, %p44
    %p46 = scmp.ne.s32.totalorder %s35, %s36
    %p47 = scmp.eq.s32.totalorder %s13, 0
    %p48 = por %p46, %p47
    %p49 = scmp.ne.s32.totalorder %s35, %s36
    %p50 = scmp.eq.s32.totalorder %s14, 1
    %p51 = por %p49, %p50
    %p53 = scmp.ne.s32.totalorder %s36, %s52
    %p54 = scmp.eq.s32.totalorder %s14, 0
    %p55 = por %p53, %p54
    %s56 = ssub.s32 %s15, %s27
    %s57 = ssub.s32 %s16, %s23
    %s58 = sor.u32 %s56, %s57
    %p59 = scmp.eq.s32.totalorder %s58, 0
    %s61 = sadd.s32 %s60, 1
    %s62 = scalar_select %p59, %s60, %s61
    %p65 = pneg %p59
    %p66 = scmp.eq.s32.totalorder %s8, 1
    %p67 = por %p65, %p66
    %p68 = scmp.ne.s32.totalorder %s60, %s63
    %p69 = scmp.eq.s32.totalorder %s8, 0
    %p70 = por %p68, %p69
    %p71 = scmp.ne.s32.totalorder %s60, %s63
    %p72 = scmp.eq.s32.totalorder %s13, 1
    %p73 = por %p71, %p72
    %p74 = scmp.ne.s32.totalorder %s63, %s64
    %p75 = scmp.eq.s32.totalorder %s13, 0
    %p76 = por %p74, %p75
    %p77 = scmp.ne.s32.totalorder %s63, %s64
    %p78 = scmp.eq.s32.totalorder %s14, 1
    %p79 = por %p77, %p78
    %p81 = scmp.ne.s32.totalorder %s64, %s80
    %p82 = scmp.eq.s32.totalorder %s14, 0
    %p83 = por %p81, %p82
    %s84 = sadd.s32 %s15, %s16
    %s85 = sadd.s32 %s27, %s23
    %s86 = ssub.s32 %s84, %s85
    %p87 = scmp.eq.s32.totalorder %s86, 0
    %s89 = sadd.s32 %s88, 1
    %s90 = scalar_select %p87, %s88, %s89
    %p93 = pneg %p87
    %p94 = scmp.eq.s32.totalorder %s8, 1
    %p95 = por %p93, %p94
    %p96 = scmp.ne.s32.totalorder %s88, %s91
    %p97 = scmp.eq.s32.totalorder %s8, 0
    %p98 = por %p96, %p97
    %p99 = scmp.ne.s32.totalorder %s88, %s91
    %p100 = scmp.eq.s32.totalorder %s13, 1
    %p101 = por %p99, %p100
    %p102 = scmp.ne.s32.totalorder %s91, %s92
    %p103 = scmp.eq.s32.totalorder %s13, 0
    %p104 = por %p102, %p103
    %p105 = scmp.ne.s32.totalorder %s91, %s92
    %p106 = scmp.eq.s32.totalorder %s14, 1
    %p107 = por %p105, %p106
    %p109 = scmp.ne.s32.totalorder %s92, %s108
    %p110 = scmp.eq.s32.totalorder %s14, 0
    %p111 = por %p109, %p110
    %p112 = scmp.le.s32.totalorder 1, %s8
    %p113 = scmp.lt.s32.totalorder %s8, 3
    %p114 = pnand %p112, %p113
    %p115 = pneg %p114
    // Predicated region
    $region9: #{_lambda_.1} parent=5 // pred_check
      _
    $region10: #{_lambda_.1} parent=5 // pred_check_branch
      %117 = sbr.rel (%p114) target = $region12
    $region11: #{_lambda_.1} parent=5 // pred_region
      %s118 = ssub.s32 %s8, 1
    $region12: #{_lambda_.1} parent=5 // pred_fallthru
      _
    %p119 = scmp.lt.s32.totalorder %s8, 2
    // Predicated region
    $region13: #{_lambda_.1} parent=5 // pred_check
      %p120 = pneg %p119
    $region14: #{_lambda_.1} parent=5 // pred_check_branch
      %122 = sbr.rel (%p120) target = $region16
    $region15: #{_lambda_.1} parent=5 // pred_region
      // Predicated region
      $region17: #{_lambda_.1} parent=15 // pred_check
        %p123 = pneg %p42
      $region18: #{_lambda_.1} parent=15 // pred_check_branch
        %125 = sbr.rel (%p123) target = $region20
      $region19: #{_lambda_.1} parent=15 // pred_region
        %s126 = smul.u32 2, %s16
        %p127 = scmp.lt.s32.totalorder %s15, 1
        %s128 = scalar_select %p127, %s15, 1
        %p129 = scmp.lt.s32.totalorder %s126, 1
        %s130 = scalar_select %p129, %s126, 1
        %s131 = smul.addr %s128, 4
        %s132 = sadd.s32 %s130, %s131
        %s133 = smul.addr %s132, 8
        %s134 = scalar_lea.vmem %s0, %s133
        %s135 = smul.u32 2, %s16
      $region20: #{_lambda_.1} parent=15 // pred_fallthru
        _
      // Predicated region
      $region21: #{_lambda_.1} parent=15 // pred_check
        %p136 = pneg %p70
      $region22: #{_lambda_.1} parent=15 // pred_check_branch
        %138 = sbr.rel (%p136) target = $region24
      $region23: #{_lambda_.1} parent=15 // pred_region
        %s139 = smul.u32 2, %s16
        %p140 = scmp.lt.s32.totalorder %s15, 1
        %s141 = scalar_select %p140, %s15, 1
        %p142 = scmp.lt.s32.totalorder %s139, 1
        %s143 = scalar_select %p142, %s139, 1
        %s144 = smul.addr %s141, 2
        %s145 = sadd.s32 %s143, %s144
        %s146 = smul.addr %s145, 8
        %s147 = scalar_lea.vmem %s1, %s146
        %s148 = smul.u32 2, %s16
      $region24: #{_lambda_.1} parent=15 // pred_fallthru
        _
    $region16: #{_lambda_.1} parent=5 // pred_fallthru
      _
    %p149 = scmp.le.s32.totalorder 1, %s8
    %p150 = scmp.lt.s32.totalorder %s8, 3
    %p151 = pnand %p149, %p150
    %p152 = pneg %p151
    // Predicated region
    $region25: #{_lambda_.1} parent=5 // pred_check
      _
    $region26: #{_lambda_.1} parent=5 // pred_check_branch
      %154 = sbr.rel (%p151) target = $region28
    $region27: #{_lambda_.1} parent=5 // pred_region
      %s155 = ssub.s32 %s8, 1
      %s156 = smul.u32 2, %s18
      %p157 = scmp.lt.s32.totalorder %s17, 1
      %s158 = scalar_select %p157, %s17, 1
      %p159 = scmp.lt.s32.totalorder %s156, 1
      %s160 = scalar_select %p159, %s156, 1
      %s161 = smul.addr %s158, 4
      %s162 = sadd.s32 %s160, %s161
      %s163 = smul.addr %s162, 8
      %s164 = scalar_lea.vmem %s0, %s163
      %p165 = pneg %p48
      %p166 = pneg %p45
      %s167 = smul.u32 2, %s18
      %p168 = scmp.lt.s32.totalorder %s17, 1
      %s169 = scalar_select %p168, %s17, 1
      %p170 = scmp.lt.s32.totalorder %s167, 1
      %s171 = scalar_select %p170, %s167, 1
      %s172 = smul.addr %s169, 2
      %s173 = sadd.s32 %s171, %s172
      %s174 = smul.addr %s173, 8
      %s175 = scalar_lea.vmem %s1, %s174
      %p176 = pneg %p76
      %p177 = pneg %p73
      %p178 = pneg %p104
      %p179 = pneg %p101
      %s180 = sadd.s32 %s17, %s18
      %p181 = scmp.lt.s32.totalorder %s180, 1
      %s182 = scalar_select %p181, %s180, 1
      %s183 = smul.addr %s182, 8
      %s184 = scalar_lea.vmem %s2, %s183
      %s185 = smul.u32 2, %s18
      %p186 = scmp.lt.s32.totalorder %s17, 1
      %s187 = scalar_select %p186, %s17, 1
      %p188 = scmp.lt.s32.totalorder %s185, 1
      %s189 = scalar_select %p188, %s185, 1
      %s190 = smul.addr %s187, 4
      %s191 = sadd.s32 %s189, %s190
      %s192 = smul.addr %s191, 8
      %s193 = scalar_lea.vmem %s0, %s192
      %s194 = smul.u32 2, %s18
      %s195 = smul.u32 2, %s18
      %p196 = scmp.lt.s32.totalorder %s17, 1
      %s197 = scalar_select %p196, %s17, 1
      %p198 = scmp.lt.s32.totalorder %s195, 1
      %s199 = scalar_select %p198, %s195, 1
      %s200 = smul.addr %s197, 2
      %s201 = sadd.s32 %s199, %s200
      %s202 = smul.addr %s201, 8
      %s203 = scalar_lea.vmem %s1, %s202
      %s204 = smul.u32 2, %s18
      %s205 = sadd.s32 %s17, %s18
      %p206 = scmp.lt.s32.totalorder %s205, 1
      %s207 = scalar_select %p206, %s205, 1
      %s208 = smul.addr %s207, 8
      %s209 = scalar_lea.vmem %s2, %s208
      %s210 = sadd.s32 %s17, %s18
      %v211 = vld [vmem:[%s193] sm:$0xff]
      %v212 = vld [vmem:[%s193 + $0x8] sm:$0xff]
      %s213 = scalar_lea.vmem %s193, 16
      %v214 = vld [vmem:[%s213] sm:$0xff]
      %v215 = vld [vmem:[%s213 + $0x8] sm:$0xff]
      %v216 = vld [vmem:[%s203] sm:$0xff]
      %v217 = vld [vmem:[%s203 + $0x8] sm:$0xff]
      %v218 = vsub.f32 %v216, %v211
      %v219 = vsub.f32 %v217, %v212
      %v220 = vmul.f32 %v218, %v218
      %v221 = vmul.f32 %v219, %v219
      %v222 = vmul.f32 %v220, 0.5
      %v223 = vmul.f32 %v221, 0.5
      %v224 = vmul.f32 %v214, -2.0
      %v225 = vmul.f32 %v215, -2.0
      %v226 = vmul.f32 %v224, 1.442695
      %v227 = vpow.pop %v226
      %v228 = vmul.f32 %v225, 1.442695
      %v229 = vpow.pop %v228
      %v230 = vmul.f32 %v222, %v227
      %v231 = vmul.f32 %v223, %v229
      %v232 = vadd.f32 %v214, %v230
      %v233 = vadd.f32 %v215, %v231
      %v234 = vadd.f32 %v232, 0.0
      %v235 = vadd.f32 %v233, 0.0
      %v236 = vadd.f32 %v234, %v235
      %237 = vst [vmem:[%s209] sm:$0xff] %v236
      %s238 = sadd.s32 %s17, %s18
      %p239 = scmp.lt.s32.totalorder %s238, 1
      %s240 = scalar_select %p239, %s238, 1
      %s241 = smul.addr %s240, 8
      %s242 = scalar_lea.vmem %s2, %s241
      // Predicated region
      $region29: #{_lambda_.1} parent=27 // pred_check
        %p243 = pneg %p101
      $region30: #{_lambda_.1} parent=27 // pred_check_branch
        %245 = sbr.rel (%p243) target = $region32
      $region31: #{_lambda_.1} parent=27 // pred_region
        %s246 = sadd.s32 %s17, %s18
      $region32: #{_lambda_.1} parent=27 // pred_fallthru
        _
    $region28: #{_lambda_.1} parent=5 // pred_fallthru
      _
    %p247 = scmp.le.s32.totalorder 2, %s8
    // Predicated region
    $region33: #{_lambda_.1} parent=5 // pred_check
      %p248 = pneg %p247
    $region34: #{_lambda_.1} parent=5 // pred_check_branch
      %250 = sbr.rel (%p248) target = $region36
    $region35: #{_lambda_.1} parent=5 // pred_region
      %s251 = ssub.s32 %s8, 2
      // Predicated region
      $region37: #{_lambda_.1} parent=35 // pred_check
        %p252 = pneg %p107
      $region38: #{_lambda_.1} parent=35 // pred_check_branch
        %254 = sbr.rel (%p252) target = $region40
      $region39: #{_lambda_.1} parent=35 // pred_region
        %s255 = sadd.s32 %s19, %s20
        %p256 = scmp.lt.s32.totalorder %s255, 1
        %s257 = scalar_select %p256, %s255, 1
        %s258 = smul.addr %s257, 8
        %s259 = scalar_lea.vmem %s2, %s258
      $region40: #{_lambda_.1} parent=35 // pred_fallthru
        _
    $region36: #{_lambda_.1} parent=5 // pred_fallthru
      _
  $region6: #{_lambda_.1} parent=0 // loop_footer
    %s12 = sadd.s32 1, %s8
  $region7: #{_lambda_.1} parent=0 // loop_footer_branch
    %7 = sbr.rel target = $region3
  $region8: #{_lambda_.1} parent=0 // loop_exit
    _

</llo_original>
